<compile_context>
chip_gen: v6e
topology: v6e:2x2x1
jax: 0.10.0
libtpu: 0.0.40
codegen_flags: <defaults>
</compile_context>

<pallas_src>
import functools

import jax
import jax.numpy as jnp
from jax.experimental import pallas as pl
from jax.experimental.pallas import tpu as pltpu


# ----------------------------------------------------------------------------
# Pass 1: conv (single deep-K GEMM per row block) + streaming BN batch stats.
# When the grid has a single step, BN + ReLU are fused in and pass 2 is skipped.
# ----------------------------------------------------------------------------
def _conv_stats_kernel(x_ref, w_ref, sel_ref, selt_ref, gb_ref, y_ref, ss_ref,
                       *, count, eps, relu, fused):
    # x_ref:    (TM, KH*Wp*Cin)      bf16  im2col'd input rows (one row per (n, oh))
    # w_ref:    (KH*Wp*Cin, OW*Cout) bf16  Toeplitz-expanded conv weights
    # sel_ref:  (OW*Cout, Cout)      f32   lane -> channel reduction selector
    # selt_ref: (Cout, OW*Cout)      f32   channel -> lane broadcast selector
    # gb_ref:   (2, Cout)            f32   [gamma; beta]
    # y_ref:    (TM, OW*Cout)        f32   conv output rows (normalized when fused)
    # ss_ref:   (2, OW*Cout)         f32   resident accumulator (constant index map):
    #                                      [sum; sumsq] while streaming, then
    #                                      [scale; shift] lane vectors at the end.
    b = pl.program_id(0)

    # Convolution for this row block: one lane-dense MXU matmul, f32 accumulate.
    acc = jnp.dot(x_ref[...], w_ref[...], preferred_element_type=jnp.float32)

    # Streaming lane-wise batch statistics (f32).
    part = jnp.concatenate(
        [jnp.sum(acc, axis=0, keepdims=True),
         jnp.sum(acc * acc, axis=0, keepdims=True)], axis=0)        # (2, OW*Cout)

    @pl.when(b == 0)
    def _():
        ss_ref[...] = part

    @pl.when(b != 0)
    def _():
        ss_ref[...] = ss_ref[...] + part

    def _scale_shift(stats_lane):
        # Reduce the W positions interleaved on the lane axis -> per-channel stats.
        # TODO(synk): single-pass E[y^2]-E[y]^2 in f32; switch to a shifted/Welford
        # accumulation if conv outputs ever have a large mean relative to their std.
        stats_c = jnp.dot(stats_lane, sel_ref[...],
                          preferred_element_type=jnp.float32)        # (2, Cout)
        inv = 1.0 / float(count)
        mean = stats_c[0:1, :] * inv
        var = stats_c[1:2, :] * inv - mean * mean                    # biased (train-mode)
        scale = gb_ref[0:1, :] * jax.lax.rsqrt(var + eps)            # (1, Cout)
        shift = gb_ref[1:2, :] - mean * scale
        sc_sh = jnp.concatenate([scale, shift], axis=0)              # (2, Cout)
        # Broadcast per-channel scale/shift back onto the flat lane layout.
        return jnp.dot(sc_sh, selt_ref[...],
                       preferred_element_type=jnp.float32)           # (2, OW*Cout)

    if fused:
        # Single grid step: normalize + ReLU right here; no second pass, no HBM
        # re-read of the conv output.
        ss_l = _scale_shift(part)
        out = acc * ss_l[0:1, :] + ss_l[1:2, :]
        if relu:
            out = jnp.maximum(out, 0.0)
        y_ref[...] = out
        ss_ref[...] = ss_l
    else:
        y_ref[...] = acc
        @pl.when(b == pl.num_programs(0) - 1)
        def _():
            ss_ref[...] = _scale_shift(ss_ref[...])


# ----------------------------------------------------------------------------
# Pass 2 (only when the grid has >1 step): streaming BN scale/shift + ReLU,
# applied in place via input_output_aliases.
# ----------------------------------------------------------------------------
def _bn_apply_kernel(y_ref, ss_ref, o_ref, *, relu):
    out = y_ref[...] * ss_ref[0:1, :] + ss_ref[1:2, :]
    if relu:
        out = jnp.maximum(out, 0.0)
    o_ref[...] = out


def _vmem_limit(block_bytes):
    # Every operand may be double-buffered by the pipeliner; add headroom and clamp
    # to the smallest per-core VMEM across generations (v7x: 64 MiB).
    need = 2 * block_bytes
    return int(min(64 * 1024 * 1024, max(16 * 1024 * 1024, 2 * need)))


# ----------------------------------------------------------------------------
# Public wrapper matching ConvBNRelu.forward (freshly-constructed module =>
# BatchNorm2d runs in training mode, i.e. normalizes with batch statistics).
# ----------------------------------------------------------------------------
@functools.partial(jax.jit,
                   static_argnames=("stride", "padding", "relu", "eps", "row_block"))
def conv_bn_relu(x_nchw, conv_w_oihw, gamma, beta, stride, padding,
                 relu=True, eps=1e-5, row_block=None):
    n, cin, h, w = x_nchw.shape
    cout, _, kh, kw = conv_w_oihw.shape
    sh = sw = int(stride)
    ph = pw = int(padding)
    hp, wp = h + 2 * ph, w + 2 * pw
    oh = (hp - kh) // sh + 1
    ow = (wp - kw) // sw + 1
    owc = ow * cout
    khk = kh * wp * cin
    rows = n * oh

    # ---- wrapper-side layout glue (XLA) -------------------------------------
    # TODO(synk): accept/emit NHWC at the op boundary and absorb the zero padding
    # into masked DMAs to drop these extra HBM passes; kept to preserve the PyTorch
    # NCHW interface.
    x = jnp.transpose(x_nchw, (0, 2, 3, 1))                         # NHWC
    xp = jnp.pad(x, ((0, 0), (ph, ph), (pw, pw), (0, 0)))
    xf = xp.reshape(n, hp, wp * cin)
    # im2col over H only -> one deep-K GEMM per row block (K = KH*Wp*Cin), bf16.
    xcol = jnp.stack([xf[:, i:i + sh * (oh - 1) + 1:sh, :] for i in range(kh)],
                     axis=2).reshape(rows, khk).astype(jnp.bfloat16)

    # Toeplitz-expanded weights over W:
    #   w_toe[(i*Wp + w')*Cin + c, w*Cout + co] = W[i, w' - w*sw, c, co]
    # (zero outside the kernel support).  One-time transform; only viable at small
    # W*Cin / W*Cout.  TODO(synk): a tiled-K conv-as-matmul (Cin/K grid axis with an
    # f32 accumulator scratch) is required for realistic channel counts / spatial
    # sizes, where this expansion would not fit HBM/VMEM.
    w_hwio = jnp.transpose(conv_w_oihw, (2, 3, 1, 0))                # (KH,KW,Cin,Cout)
    b5 = jnp.zeros((kh, wp, cin, ow, cout), jnp.float32)
    for w_out in range(ow):
        for j in range(kw):
            b5 = b5.at[:, w_out * sw + j, :, w_out, :].set(w_hwio[:, j, :, :])
    w_toe = b5.reshape(khk, owc).astype(jnp.bfloat16)

    # Constant selectors for per-channel reduce / lane broadcast (kept f32 so the
    # batch-statistics reductions stay in full precision).
    sel = jnp.tile(jnp.eye(cout, dtype=jnp.float32), (ow, 1))        # (OW*Cout, Cout)
    selt = jnp.transpose(sel)                                        # (Cout, OW*Cout)
    gb = jnp.stack([gamma.astype(jnp.float32),
                    beta.astype(jnp.float32)], axis=0)               # (2, Cout)

    # ---- row-block tiling ----------------------------------------------------
    if row_block is None:
        tm = rows if rows <= 512 else next(
            c for c in (512, 256, 128, 64, 32, 16, 8, rows) if rows % c == 0)
    else:
        tm = int(row_block)
    if rows % tm != 0:
        tm = rows
    nblk = rows // tm
    fused = (nblk == 1)

    block_bytes = (tm * khk * 2 + khk * owc * 2 + owc * cout * 4 + cout * owc * 4
                   + 2 * cout * 4 + tm * owc * 4 + 2 * owc * 4)
    vmem_limit = _vmem_limit(block_bytes)

    kern1 = functools.partial(_conv_stats_kernel, count=n * oh * ow, eps=float(eps),
                              relu=bool(relu), fused=fused)
    y, ss = pl.pallas_call(
        kern1,
        out_shape=(jax.ShapeDtypeStruct((rows, owc), jnp.float32),
                   jax.ShapeDtypeStruct((2, owc), jnp.float32)),
        grid_spec=pltpu.PrefetchScalarGridSpec(
            num_scalar_prefetch=0,
            grid=(nblk,),
            in_specs=[
                pl.BlockSpec((tm, khk), lambda b: (b, 0)),
                # Constant operands (fetched once per step).  TODO(synk): single-
                # buffer these (pipeline_mode=pl.Buffered(1) / manual DMA) once
                # w_toe is large enough that its double buffer matters against
                # v7x's 64 MiB VMEM.
                pl.BlockSpec((khk, owc), lambda b: (0, 0)),
                pl.BlockSpec((owc, cout), lambda b: (0, 0)),
                pl.BlockSpec((cout, owc), lambda b: (0, 0)),
                pl.BlockSpec((2, cout), lambda b: (0, 0)),
            ],
            out_specs=(
                pl.BlockSpec((tm, owc), lambda b: (b, 0)),
                # Constant index map: tiny resident (2, OW*Cout) stats accumulator.
                pl.BlockSpec((2, owc), lambda b: (0, 0)),
            ),
        ),
        compiler_params=pltpu.CompilerParams(
            # Streaming-stats accumulation makes the row-block axis a reduction.
            # TODO(synk): on v7x add a 'parallel' axis (per-core partial sum/sumsq
            # + combine) so both TensorCores are fed.
            dimension_semantics=("arbitrary",),
            vmem_limit_bytes=vmem_limit,
        ),
    )(xcol, w_toe, sel, selt, gb)

    if not fused:
        kern2 = functools.partial(_bn_apply_kernel, relu=bool(relu))
        y = pl.pallas_call(
            kern2,
            out_shape=jax.ShapeDtypeStruct((rows, owc), jnp.float32),
            grid_spec=pltpu.PrefetchScalarGridSpec(
                num_scalar_prefetch=0,
                grid=(nblk,),
                in_specs=[
                    pl.BlockSpec((tm, owc), lambda b: (b, 0)),
                    pl.BlockSpec((2, owc), lambda b: (0, 0)),
                ],
                out_specs=pl.BlockSpec((tm, owc), lambda b: (b, 0)),
            ),
            compiler_params=pltpu.CompilerParams(
                dimension_semantics=("parallel",),
                vmem_limit_bytes=vmem_limit,
            ),
            input_output_aliases={0: 0},     # normalize in place, no extra HBM alloc
        )(y, ss)

    out = y.reshape(n, oh, ow, cout)
    return jnp.transpose(out, (0, 3, 1, 2))  # back to NCHW to match the module


if __name__ == "__main__":
    key = jax.random.PRNGKey(0)
    k1, k2, k3, k4 = jax.random.split(key, 4)

    # small shapes consistent with the module: batch=2, in_planes=4, 16x16 spatial,
    # out_planes=8, kernel_size=3, stride=1, padding=1, relu=True
    N, Cin, H, W = 2, 4, 16, 16
    Cout, K, stride, padding = 8, 3, 1, 1

    x = jax.random.normal(k1, (N, Cin, H, W), jnp.float32)
    conv_w = 0.1 * jax.random.normal(k2, (Cout, Cin, K, K), jnp.float32)  # OIHW, bias=False
    gamma = 1.0 + 0.1 * jax.random.normal(k3, (Cout,), jnp.float32)       # BN weight
    beta = 0.1 * jax.random.normal(k4, (Cout,), jnp.float32)              # BN bias

    # XLA reference: conv + train-mode BN (batch stats) + ReLU, all f32.
    ref_conv = jax.lax.conv_general_dilated(
        x, conv_w, window_strides=(stride, stride),
        padding=[(padding, padding), (padding, padding)],
        dimension_numbers=("NCHW", "OIHW", "NCHW"))
    m = jnp.mean(ref_conv, axis=(0, 2, 3), keepdims=True)
    v = jnp.var(ref_conv, axis=(0, 2, 3), keepdims=True)
    ref = (ref_conv - m) / jnp.sqrt(v + 1e-5)
    ref = ref * gamma.reshape(1, -1, 1, 1) + beta.reshape(1, -1, 1, 1)
    ref = jnp.maximum(ref, 0.0)

    # 1) Default path: grid collapses to a single step -> fully fused single kernel.
    out = conv_bn_relu(x, conv_w, gamma, beta, stride=stride, padding=padding, relu=True)
    out = jax.block_until_ready(out)
    assert out.shape == (N, Cout, H, W)
    assert jnp.allclose(out, ref, atol=5e-2, rtol=5e-2), "fused path mismatch vs XLA reference"

    # 2) Forced multi-block path: exercises the streaming sum/sumsq accumulator and
    #    the in-place (aliased) BN+ReLU second pass.
    out2 = conv_bn_relu(x, conv_w, gamma, beta, stride=stride, padding=padding,
                        relu=True, row_block=8)
    out2 = jax.block_until_ready(out2)
    assert jnp.allclose(out2, ref, atol=5e-2, rtol=5e-2), "streaming path mismatch vs XLA reference"

    print("KERNEL_OK")
</pallas_src>

<mosaic_0001>
module attributes {stable_mosaic.version = 11 : i64} {
  func.func @_conv_stats_kernel(%arg0: i32, %arg1: memref<32x216xbf16, #tpu.memory_space<vmem>>, %arg2: memref<216x128xbf16, #tpu.memory_space<vmem>>, %arg3: memref<128x8xf32, #tpu.memory_space<vmem>>, %arg4: memref<8x128xf32, #tpu.memory_space<vmem>>, %arg5: memref<2x8xf32, #tpu.memory_space<vmem>>, %arg6: memref<32x128xf32, #tpu.memory_space<vmem>>, %arg7: memref<2x128xf32, #tpu.memory_space<vmem>>) attributes {dimension_semantics = [#tpu.dimension_semantics<arbitrary>], iteration_bounds = array<i64: 1>, scalar_prefetch = 0 : i64, scratch_operands = 0 : i64, tpu.core_type = #tpu.core_type<tc>, window_params = [{transform_indices = @transform_0, window_bounds = array<i64: 32, 216>}, {pipeline_mode = #tpu.pipeline_mode<synchronous>, transform_indices = @transform_1, window_bounds = array<i64: 216, 128>}, {pipeline_mode = #tpu.pipeline_mode<synchronous>, transform_indices = @transform_2, window_bounds = array<i64: 128, 8>}, {pipeline_mode = #tpu.pipeline_mode<synchronous>, transform_indices = @transform_3, window_bounds = array<i64: 8, 128>}, {pipeline_mode = #tpu.pipeline_mode<synchronous>, transform_indices = @transform_4, window_bounds = array<i64: 2, 8>}, {transform_indices = @transform_5, window_bounds = array<i64: 32, 128>}, {pipeline_mode = #tpu.pipeline_mode<synchronous>, transform_indices = @transform_6, window_bounds = array<i64: 2, 128>}]} {
    %c0 = arith.constant 0 : index
    %c0_0 = arith.constant 0 : index
    %0 = vector.load %arg1[%c0, %c0_0] : memref<32x216xbf16, #tpu.memory_space<vmem>>, vector<32x216xbf16>
    %c0_1 = arith.constant 0 : index
    %c0_2 = arith.constant 0 : index
    %1 = vector.load %arg2[%c0_1, %c0_2] : memref<216x128xbf16, #tpu.memory_space<vmem>>, vector<216x128xbf16>
    %cst = arith.constant dense<0.000000e+00> : vector<32x128xf32>
    %2 = tpu.matmul %0, %1, %cst {dimension_numbers = #tpu.dot_dimension_numbers<[1], [0], [0], [1], [0, 0, 1, 1], [], []>} : vector<32x216xbf16>, vector<216x128xbf16>, vector<32x128xf32> -> vector<32x128xf32>
    %cst_3 = arith.constant dense<0.000000e+00> : vector<128xf32>
    %3 = vector.multi_reduction <add>, %2, %cst_3 [0] : vector<32x128xf32> to vector<128xf32>
    %4 = vector.shape_cast %3 : vector<128xf32> to vector<1x128xf32>
    %5 = arith.mulf %2, %2 : vector<32x128xf32>
    %cst_4 = arith.constant dense<0.000000e+00> : vector<128xf32>
    %6 = vector.multi_reduction <add>, %5, %cst_4 [0] : vector<32x128xf32> to vector<128xf32>
    %7 = vector.shape_cast %6 : vector<128xf32> to vector<1x128xf32>
    %8 = tpu.concatenate %4, %7 in 0 : vector<1x128xf32>, vector<1x128xf32> -> vector<2x128xf32>
    %c0_i32 = arith.constant 0 : i32
    %9 = arith.cmpi eq, %arg0, %c0_i32 : i32
    %10 = arith.extui %9 : i1 to i32
    %c0_i32_5 = arith.constant 0 : i32
    %11 = arith.cmpi ne, %10, %c0_i32_5 : i32
    scf.if %11 {
      %c0_25 = arith.constant 0 : index
      %c0_26 = arith.constant 0 : index
      %46 = vector.load %arg7[%c0_25, %c0_26] : memref<2x128xf32, #tpu.memory_space<vmem>>, vector<2x128xf32>
      tpu.vector_store %arg7[%c0_25, %c0_26], %8 {strides = array<i32>} : memref<2x128xf32, #tpu.memory_space<vmem>>, vector<2x128xf32>,
    } else {
    }
    %c0_i32_6 = arith.constant 0 : i32
    %12 = arith.cmpi ne, %arg0, %c0_i32_6 : i32
    %13 = arith.extui %12 : i1 to i32
    %c0_i32_7 = arith.constant 0 : i32
    %14 = arith.cmpi ne, %13, %c0_i32_7 : i32
    scf.if %14 {
      %c0_25 = arith.constant 0 : index
      %c0_26 = arith.constant 0 : index
      %46 = vector.load %arg7[%c0_25, %c0_26] : memref<2x128xf32, #tpu.memory_space<vmem>>, vector<2x128xf32>
      %47 = arith.addf %46, %8 : vector<2x128xf32>
      %c0_27 = arith.constant 0 : index
      %c0_28 = arith.constant 0 : index
      %48 = vector.load %arg7[%c0_27, %c0_28] : memref<2x128xf32, #tpu.memory_space<vmem>>, vector<2x128xf32>
      tpu.vector_store %arg7[%c0_27, %c0_28], %47 {strides = array<i32>} : memref<2x128xf32, #tpu.memory_space<vmem>>, vector<2x128xf32>,
    } else {
    }
    %c0_8 = arith.constant 0 : index
    %c0_9 = arith.constant 0 : index
    %15 = vector.load %arg3[%c0_8, %c0_9] : memref<128x8xf32, #tpu.memory_space<vmem>>, vector<128x8xf32>
    %cst_10 = arith.constant dense<0.000000e+00> : vector<2x8xf32>
    %16 = tpu.matmul %8, %15, %cst_10 {dimension_numbers = #tpu.dot_dimension_numbers<[1], [0], [0], [1], [0, 0, 1, 1], [], []>} : vector<2x128xf32>, vector<128x8xf32>, vector<2x8xf32> -> vector<2x8xf32>
    %17 = vector.extract_strided_slice %16 {offsets = [0, 0], sizes = [1, 8], strides = [1, 1]} : vector<2x8xf32> to vector<1x8xf32>
    %cst_11 = arith.constant 0.001953125 : f32
    %18 = vector.broadcast %cst_11 : f32 to vector<1x8xf32>
    %19 = arith.mulf %17, %18 : vector<1x8xf32>
    %20 = vector.extract_strided_slice %16 {offsets = [1, 0], sizes = [1, 8], strides = [1, 1]} : vector<2x8xf32> to vector<1x8xf32>
    %cst_12 = arith.constant 0.001953125 : f32
    %21 = vector.broadcast %cst_12 : f32 to vector<1x8xf32>
    %22 = arith.mulf %20, %21 : vector<1x8xf32>
    %23 = arith.mulf %19, %19 : vector<1x8xf32>
    %24 = arith.subf %22, %23 : vector<1x8xf32>
    %c0_13 = arith.constant 0 : index
    %c0_14 = arith.constant 0 : index
    %25 = vector.load %arg5[%c0_13, %c0_14] : memref<2x8xf32, #tpu.memory_space<vmem>>, vector<1x8xf32>
    %cst_15 = arith.constant 9.99999974E-6 : f32
    %26 = vector.broadcast %cst_15 : f32 to vector<1x8xf32>
    %27 = arith.addf %24, %26 : vector<1x8xf32>
    %28 = math.rsqrt %27 : vector<1x8xf32>
    %29 = arith.mulf %25, %28 : vector<1x8xf32>
    %c1 = arith.constant 1 : index
    %c0_16 = arith.constant 0 : index
    %30 = vector.load %arg5[%c1, %c0_16] : memref<2x8xf32, #tpu.memory_space<vmem>>, vector<1x8xf32>
    %31 = arith.mulf %19, %29 : vector<1x8xf32>
    %32 = arith.subf %30, %31 : vector<1x8xf32>
    %33 = tpu.concatenate %29, %32 in 0 : vector<1x8xf32>, vector<1x8xf32> -> vector<2x8xf32>
    %c0_17 = arith.constant 0 : index
    %c0_18 = arith.constant 0 : index
    %34 = vector.load %arg4[%c0_17, %c0_18] : memref<8x128xf32, #tpu.memory_space<vmem>>, vector<8x128xf32>
    %cst_19 = arith.constant dense<0.000000e+00> : vector<2x128xf32>
    %35 = tpu.matmul %33, %34, %cst_19 {dimension_numbers = #tpu.dot_dimension_numbers<[1], [0], [0], [1], [0, 0, 1, 1], [], []>} : vector<2x8xf32>, vector<8x128xf32>, vector<2x128xf32> -> vector<2x128xf32>
    %36 = vector.extract_strided_slice %35 {offsets = [0, 0], sizes = [1, 128], strides = [1, 1]} : vector<2x128xf32> to vector<1x128xf32>
    %37 = vector.broadcast %36 : vector<1x128xf32> to vector<32x128xf32>
    %38 = arith.mulf %2, %37 : vector<32x128xf32>
    %39 = vector.extract_strided_slice %35 {offsets = [1, 0], sizes = [1, 128], strides = [1, 1]} : vector<2x128xf32> to vector<1x128xf32>
    %40 = vector.broadcast %39 : vector<1x128xf32> to vector<32x128xf32>
    %41 = arith.addf %38, %40 : vector<32x128xf32>
    %cst_20 = arith.constant 0.000000e+00 : f32
    %42 = vector.broadcast %cst_20 : f32 to vector<32x128xf32>
    %43 = arith.maximumf %41, %42 : vector<32x128xf32>
    %c0_21 = arith.constant 0 : index
    %c0_22 = arith.constant 0 : index
    %44 = vector.load %arg6[%c0_21, %c0_22] : memref<32x128xf32, #tpu.memory_space<vmem>>, vector<32x128xf32>
    tpu.vector_store %arg6[%c0_21, %c0_22], %43 {strides = array<i32>} : memref<32x128xf32, #tpu.memory_space<vmem>>, vector<32x128xf32>,
    %c0_23 = arith.constant 0 : index
    %c0_24 = arith.constant 0 : index
    %45 = vector.load %arg7[%c0_23, %c0_24] : memref<2x128xf32, #tpu.memory_space<vmem>>, vector<2x128xf32>
    tpu.vector_store %arg7[%c0_23, %c0_24], %35 {strides = array<i32>} : memref<2x128xf32, #tpu.memory_space<vmem>>, vector<2x128xf32>,
    return
  }
  func.func @transform_0(%arg0: i32) -> (i32, i32) {
    %c0_i32 = arith.constant 0 : i32
    %c0_i32_0 = arith.constant 0 : i32
    return %arg0, %c0_i32 : i32, i32
  }
  func.func @transform_1(%arg0: i32) -> (i32, i32) {
    %c0_i32 = arith.constant 0 : i32
    %c0_i32_0 = arith.constant 0 : i32
    %c0_i32_1 = arith.constant 0 : i32
    return %c0_i32, %c0_i32_0 : i32, i32
  }
  func.func @transform_2(%arg0: i32) -> (i32, i32) {
    %c0_i32 = arith.constant 0 : i32
    %c0_i32_0 = arith.constant 0 : i32
    %c0_i32_1 = arith.constant 0 : i32
    return %c0_i32, %c0_i32_0 : i32, i32
  }
  func.func @transform_3(%arg0: i32) -> (i32, i32) {
    %c0_i32 = arith.constant 0 : i32
    %c0_i32_0 = arith.constant 0 : i32
    %c0_i32_1 = arith.constant 0 : i32
    return %c0_i32, %c0_i32_0 : i32, i32
  }
  func.func @transform_4(%arg0: i32) -> (i32, i32) {
    %c0_i32 = arith.constant 0 : i32
    %c0_i32_0 = arith.constant 0 : i32
    %c0_i32_1 = arith.constant 0 : i32
    return %c0_i32, %c0_i32_0 : i32, i32
  }
  func.func @transform_5(%arg0: i32) -> (i32, i32) {
    %c0_i32 = arith.constant 0 : i32
    %c0_i32_0 = arith.constant 0 : i32
    return %arg0, %c0_i32 : i32, i32
  }
  func.func @transform_6(%arg0: i32) -> (i32, i32) {
    %c0_i32 = arith.constant 0 : i32
    %c0_i32_0 = arith.constant 0 : i32
    %c0_i32_1 = arith.constant 0 : i32
    return %c0_i32, %c0_i32_0 : i32, i32
  }
}

</mosaic_0001>

<llo_original>
// kernel: tile.9
$region0: #{tile.9}
  %s0 = inlined_call_operand.vmem [shape: f32[16,8,8], index: 0, kind: input, shape index: {}]
  %s1 = inlined_call_operand.vmem [shape: f32[128,8], index: 1, kind: output, shape index: {}]
  %s2 = smov 3
  %v3 = vld [vmem:[%s0] ss:$16 sm:%s2]
  %s4 = smov 12
  %v5 = vld [vmem:[%s0] ss:$16 sm:%s4]
  %vm6 = vcmask 1043458
  %v7 = vsel %vm6, %v5, %v3
  %s8 = smov 48
  %v9 = vld [vmem:[%s0] ss:$16 sm:%s8]
  %vm10 = vcmask 1045508
  %v11 = vsel %vm10, %v9, %v7
  %s12 = smov 192
  %v13 = vld [vmem:[%s0] ss:$16 sm:%s12]
  %vm14 = vcmask 1047558
  %v15 = vsel %vm14, %v13, %v11
  %vm16 = vcmask 64512
  %17 = vst.msk [vmem:[%s1] sm:$0xff] %vm16, %v15
  %s18 = scalar_lea.vmem %s0, 15
  %s19 = smov 3
  %v20 = vld [vmem:[%s18] ss:$16 sm:%s19]
  %s21 = scalar_lea.vmem %s0, 15
  %s22 = smov 12
  %v23 = vld [vmem:[%s21] ss:$16 sm:%s22]
  %vm24 = vcmask 1043458
  %v25 = vsel %vm24, %v23, %v20
  %s26 = scalar_lea.vmem %s0, 15
  %s27 = smov 48
  %v28 = vld [vmem:[%s26] ss:$16 sm:%s27]
  %vm29 = vcmask 1045508
  %v30 = vsel %vm29, %v28, %v25
  %s31 = scalar_lea.vmem %s0, 15
  %s32 = smov 192
  %v33 = vld [vmem:[%s31] ss:$16 sm:%s32]
  %vm34 = vcmask 1047558
  %v35 = vsel %vm34, %v33, %v30
  %36 = vrot.lane.b32.xlu0 %v35, 120
  %v37 = vpop.permute.xlu0 %36
  %vm38 = vcmask 1048512
  %39 = vst.msk [vmem:[%s1] sm:$0xff] %vm38, %v37
  %s40 = scalar_lea.vmem %s0, 14
  %s41 = smov 3
  %v42 = vld [vmem:[%s40] ss:$16 sm:%s41]
  %s43 = scalar_lea.vmem %s0, 14
  %s44 = smov 12
  %v45 = vld [vmem:[%s43] ss:$16 sm:%s44]
  %vm46 = vcmask 1043458
  %v47 = vsel %vm46, %v45, %v42
  %s48 = scalar_lea.vmem %s0, 14
  %s49 = smov 48
  %v50 = vld [vmem:[%s48] ss:$16 sm:%s49]
  %vm51 = vcmask 1045508
  %v52 = vsel %vm51, %v50, %v47
  %s53 = scalar_lea.vmem %s0, 14
  %s54 = smov 192
  %v55 = vld [vmem:[%s53] ss:$16 sm:%s54]
  %vm56 = vcmask 1047558
  %v57 = vsel %vm56, %v55, %v52
  %58 = vrot.lane.b32.xlu0 %v57, 112
  %v59 = vpop.permute.xlu0 %58
  %vm60 = vcmask 982912
  %61 = vst.msk [vmem:[%s1] sm:$0xff] %vm60, %v59
  %s62 = scalar_lea.vmem %s0, 13
  %s63 = smov 3
  %v64 = vld [vmem:[%s62] ss:$16 sm:%s63]
  %s65 = scalar_lea.vmem %s0, 13
  %s66 = smov 12
  %v67 = vld [vmem:[%s65] ss:$16 sm:%s66]
  %vm68 = vcmask 1043458
  %v69 = vsel %vm68, %v67, %v64
  %s70 = scalar_lea.vmem %s0, 13
  %s71 = smov 48
  %v72 = vld [vmem:[%s70] ss:$16 sm:%s71]
  %vm73 = vcmask 1045508
  %v74 = vsel %vm73, %v72, %v69
  %s75 = scalar_lea.vmem %s0, 13
  %s76 = smov 192
  %v77 = vld [vmem:[%s75] ss:$16 sm:%s76]
  %vm78 = vcmask 1047558
  %v79 = vsel %vm78, %v77, %v74
  %80 = vrot.lane.b32.xlu0 %v79, 104
  %v81 = vpop.permute.xlu0 %80
  %vm82 = vcmask 917312
  %83 = vst.msk [vmem:[%s1] sm:$0xff] %vm82, %v81
  %s84 = scalar_lea.vmem %s0, 12
  %s85 = smov 3
  %v86 = vld [vmem:[%s84] ss:$16 sm:%s85]
  %s87 = scalar_lea.vmem %s0, 12
  %s88 = smov 12
  %v89 = vld [vmem:[%s87] ss:$16 sm:%s88]
  %vm90 = vcmask 1043458
  %v91 = vsel %vm90, %v89, %v86
  %s92 = scalar_lea.vmem %s0, 12
  %s93 = smov 48
  %v94 = vld [vmem:[%s92] ss:$16 sm:%s93]
  %vm95 = vcmask 1045508
  %v96 = vsel %vm95, %v94, %v91
  %s97 = scalar_lea.vmem %s0, 12
  %s98 = smov 192
  %v99 = vld [vmem:[%s97] ss:$16 sm:%s98]
  %vm100 = vcmask 1047558
  %v101 = vsel %vm100, %v99, %v96
  %102 = vrot.lane.b32.xlu0 %v101, 96
  %v103 = vpop.permute.xlu0 %102
  %vm104 = vcmask 851712
  %105 = vst.msk [vmem:[%s1] sm:$0xff] %vm104, %v103
  %s106 = scalar_lea.vmem %s0, 11
  %s107 = smov 3
  %v108 = vld [vmem:[%s106] ss:$16 sm:%s107]
  %s109 = scalar_lea.vmem %s0, 11
  %s110 = smov 12
  %v111 = vld [vmem:[%s109] ss:$16 sm:%s110]
  %vm112 = vcmask 1043458
  %v113 = vsel %vm112, %v111, %v108
  %s114 = scalar_lea.vmem %s0, 11
  %s115 = smov 48
  %v116 = vld [vmem:[%s114] ss:$16 sm:%s115]
  %vm117 = vcmask 1045508
  %v118 = vsel %vm117, %v116, %v113
  %s119 = scalar_lea.vmem %s0, 11
  %s120 = smov 192
  %v121 = vld [vmem:[%s119] ss:$16 sm:%s120]
  %vm122 = vcmask 1047558
  %v123 = vsel %vm122, %v121, %v118
  %124 = vrot.lane.b32.xlu0 %v123, 88
  %v125 = vpop.permute.xlu0 %124
  %vm126 = vcmask 786112
  %127 = vst.msk [vmem:[%s1] sm:$0xff] %vm126, %v125
  %s128 = scalar_lea.vmem %s0, 10
  %s129 = smov 3
  %v130 = vld [vmem:[%s128] ss:$16 sm:%s129]
  %s131 = scalar_lea.vmem %s0, 10
  %s132 = smov 12
  %v133 = vld [vmem:[%s131] ss:$16 sm:%s132]
  %vm134 = vcmask 1043458
  %v135 = vsel %vm134, %v133, %v130
  %s136 = scalar_lea.vmem %s0, 10
  %s137 = smov 48
  %v138 = vld [vmem:[%s136] ss:$16 sm:%s137]
  %vm139 = vcmask 1045508
  %v140 = vsel %vm139, %v138, %v135
  %s141 = scalar_lea.vmem %s0, 10
  %s142 = smov 192
  %v143 = vld [vmem:[%s141] ss:$16 sm:%s142]
  %vm144 = vcmask 1047558
  %v145 = vsel %vm144, %v143, %v140
  %146 = vrot.lane.b32.xlu0 %v145, 80
  %v147 = vpop.permute.xlu0 %146
  %vm148 = vcmask 720512
  %149 = vst.msk [vmem:[%s1] sm:$0xff] %vm148, %v147
  %s150 = scalar_lea.vmem %s0, 9
  %s151 = smov 3
  %v152 = vld [vmem:[%s150] ss:$16 sm:%s151]
  %s153 = scalar_lea.vmem %s0, 9
  %s154 = smov 12
  %v155 = vld [vmem:[%s153] ss:$16 sm:%s154]
  %vm156 = vcmask 1043458
  %v157 = vsel %vm156, %v155, %v152
  %s158 = scalar_lea.vmem %s0, 9
  %s159 = smov 48
  %v160 = vld [vmem:[%s158] ss:$16 sm:%s159]
  %vm161 = vcmask 1045508
  %v162 = vsel %vm161, %v160, %v157
  %s163 = scalar_lea.vmem %s0, 9
  %s164 = smov 192
  %v165 = vld [vmem:[%s163] ss:$16 sm:%s164]
  %vm166 = vcmask 1047558
  %v167 = vsel %vm166, %v165, %v162
  %168 = vrot.lane.b32.xlu0 %v167, 72
  %v169 = vpop.permute.xlu0 %168
  %vm170 = vcmask 654912
  %171 = vst.msk [vmem:[%s1] sm:$0xff] %vm170, %v169
  %s172 = scalar_lea.vmem %s0, 8
  %s173 = smov 3
  %v174 = vld [vmem:[%s172] ss:$16 sm:%s173]
  %s175 = scalar_lea.vmem %s0, 8
  %s176 = smov 12
  %v177 = vld [vmem:[%s175] ss:$16 sm:%s176]
  %vm178 = vcmask 1043458
  %v179 = vsel %vm178, %v177, %v174
  %s180 = scalar_lea.vmem %s0, 8
  %s181 = smov 48
  %v182 = vld [vmem:[%s180] ss:$16 sm:%s181]
  %vm183 = vcmask 1045508
  %v184 = vsel %vm183, %v182, %v179
  %s185 = scalar_lea.vmem %s0, 8
  %s186 = smov 192
  %v187 = vld [vmem:[%s185] ss:$16 sm:%s186]
  %vm188 = vcmask 1047558
  %v189 = vsel %vm188, %v187, %v184
  %190 = vrot.lane.b32.xlu0 %v189, 64
  %v191 = vpop.permute.xlu0 %190
  %vm192 = vcmask 589312
  %193 = vst.msk [vmem:[%s1] sm:$0xff] %vm192, %v191
  %s194 = scalar_lea.vmem %s0, 7
  %s195 = smov 3
  %v196 = vld [vmem:[%s194] ss:$16 sm:%s195]
  %s197 = scalar_lea.vmem %s0, 7
  %s198 = smov 12
  %v199 = vld [vmem:[%s197] ss:$16 sm:%s198]
  %vm200 = vcmask 1043458
  %v201 = vsel %vm200, %v199, %v196
  %s202 = scalar_lea.vmem %s0, 7
  %s203 = smov 48
  %v204 = vld [vmem:[%s202] ss:$16 sm:%s203]
  %vm205 = vcmask 1045508
  %v206 = vsel %vm205, %v204, %v201
  %s207 = scalar_lea.vmem %s0, 7
  %s208 = smov 192
  %v209 = vld [vmem:[%s207] ss:$16 sm:%s208]
  %vm210 = vcmask 1047558
  %v211 = vsel %vm210, %v209, %v206
  %212 = vrot.lane.b32.xlu0 %v211, 56
  %v213 = vpop.permute.xlu0 %212
  %vm214 = vcmask 523712
  %215 = vst.msk [vmem:[%s1] sm:$0xff] %vm214, %v213
  %s216 = scalar_lea.vmem %s0, 6
  %s217 = smov 3
  %v218 = vld [vmem:[%s216] ss:$16 sm:%s217]
  %s219 = scalar_lea.vmem %s0, 6
  %s220 = smov 12
  %v221 = vld [vmem:[%s219] ss:$16 sm:%s220]
  %vm222 = vcmask 1043458
  %v223 = vsel %vm222, %v221, %v218
  %s224 = scalar_lea.vmem %s0, 6
  %s225 = smov 48
  %v226 = vld [vmem:[%s224] ss:$16 sm:%s225]
  %vm227 = vcmask 1045508
  %v228 = vsel %vm227, %v226, %v223
  %s229 = scalar_lea.vmem %s0, 6
  %s230 = smov 192
  %v231 = vld [vmem:[%s229] ss:$16 sm:%s230]
  %vm232 = vcmask 1047558
  %v233 = vsel %vm232, %v231, %v228
  %234 = vrot.lane.b32.xlu0 %v233, 48
  %v235 = vpop.permute.xlu0 %234
  %vm236 = vcmask 458112
  %237 = vst.msk [vmem:[%s1] sm:$0xff] %vm236, %v235
  %s238 = scalar_lea.vmem %s0, 5
  %s239 = smov 3
  %v240 = vld [vmem:[%s238] ss:$16 sm:%s239]
  %s241 = scalar_lea.vmem %s0, 5
  %s242 = smov 12
  %v243 = vld [vmem:[%s241] ss:$16 sm:%s242]
  %vm244 = vcmask 1043458
  %v245 = vsel %vm244, %v243, %v240
  %s246 = scalar_lea.vmem %s0, 5
  %s247 = smov 48
  %v248 = vld [vmem:[%s246] ss:$16 sm:%s247]
  %vm249 = vcmask 1045508
  %v250 = vsel %vm249, %v248, %v245
  %s251 = scalar_lea.vmem %s0, 5
  %s252 = smov 192
  %v253 = vld [vmem:[%s251] ss:$16 sm:%s252]
  %vm254 = vcmask 1047558
  %v255 = vsel %vm254, %v253, %v250
  %256 = vrot.lane.b32.xlu0 %v255, 40
  %v257 = vpop.permute.xlu0 %256
  %vm258 = vcmask 392512
  %259 = vst.msk [vmem:[%s1] sm:$0xff] %vm258, %v257
  %s260 = scalar_lea.vmem %s0, 4
  %s261 = smov 3
  %v262 = vld [vmem:[%s260] ss:$16 sm:%s261]
  %s263 = scalar_lea.vmem %s0, 4
  %s264 = smov 12
  %v265 = vld [vmem:[%s263] ss:$16 sm:%s264]
  %vm266 = vcmask 1043458
  %v267 = vsel %vm266, %v265, %v262
  %s268 = scalar_lea.vmem %s0, 4
  %s269 = smov 48
  %v270 = vld [vmem:[%s268] ss:$16 sm:%s269]
  %vm271 = vcmask 1045508
  %v272 = vsel %vm271, %v270, %v267
  %s273 = scalar_lea.vmem %s0, 4
  %s274 = smov 192
  %v275 = vld [vmem:[%s273] ss:$16 sm:%s274]
  %vm276 = vcmask 1047558
  %v277 = vsel %vm276, %v275, %v272
  %278 = vrot.lane.b32.xlu0 %v277, 32
  %v279 = vpop.permute.xlu0 %278
  %vm280 = vcmask 326912
  %281 = vst.msk [vmem:[%s1] sm:$0xff] %vm280, %v279
  %s282 = scalar_lea.vmem %s0, 3
  %s283 = smov 3
  %v284 = vld [vmem:[%s282] ss:$16 sm:%s283]
  %s285 = scalar_lea.vmem %s0, 3
  %s286 = smov 12
  %v287 = vld [vmem:[%s285] ss:$16 sm:%s286]
  %vm288 = vcmask 1043458
  %v289 = vsel %vm288, %v287, %v284
  %s290 = scalar_lea.vmem %s0, 3
  %s291 = smov 48
  %v292 = vld [vmem:[%s290] ss:$16 sm:%s291]
  %vm293 = vcmask 1045508
  %v294 = vsel %vm293, %v292, %v289
  %s295 = scalar_lea.vmem %s0, 3
  %s296 = smov 192
  %v297 = vld [vmem:[%s295] ss:$16 sm:%s296]
  %vm298 = vcmask 1047558
  %v299 = vsel %vm298, %v297, %v294
  %300 = vrot.lane.b32.xlu0 %v299, 24
  %v301 = vpop.permute.xlu0 %300
  %vm302 = vcmask 261312
  %303 = vst.msk [vmem:[%s1] sm:$0xff] %vm302, %v301
  %s304 = scalar_lea.vmem %s0, 2
  %s305 = smov 3
  %v306 = vld [vmem:[%s304] ss:$16 sm:%s305]
  %s307 = scalar_lea.vmem %s0, 2
  %s308 = smov 12
  %v309 = vld [vmem:[%s307] ss:$16 sm:%s308]
  %vm310 = vcmask 1043458
  %v311 = vsel %vm310, %v309, %v306
  %s312 = scalar_lea.vmem %s0, 2
  %s313 = smov 48
  %v314 = vld [vmem:[%s312] ss:$16 sm:%s313]
  %vm315 = vcmask 1045508
  %v316 = vsel %vm315, %v314, %v311
  %s317 = scalar_lea.vmem %s0, 2
  %s318 = smov 192
  %v319 = vld [vmem:[%s317] ss:$16 sm:%s318]
  %vm320 = vcmask 1047558
  %v321 = vsel %vm320, %v319, %v316
  %322 = vrot.lane.b32.xlu0 %v321, 16
  %v323 = vpop.permute.xlu0 %322
  %vm324 = vcmask 195712
  %325 = vst.msk [vmem:[%s1] sm:$0xff] %vm324, %v323
  %s326 = scalar_lea.vmem %s0, 1
  %s327 = smov 3
  %v328 = vld [vmem:[%s326] ss:$16 sm:%s327]
  %s329 = scalar_lea.vmem %s0, 1
  %s330 = smov 12
  %v331 = vld [vmem:[%s329] ss:$16 sm:%s330]
  %vm332 = vcmask 1043458
  %v333 = vsel %vm332, %v331, %v328
  %s334 = scalar_lea.vmem %s0, 1
  %s335 = smov 48
  %v336 = vld [vmem:[%s334] ss:$16 sm:%s335]
  %vm337 = vcmask 1045508
  %v338 = vsel %vm337, %v336, %v333
  %s339 = scalar_lea.vmem %s0, 1
  %s340 = smov 192
  %v341 = vld [vmem:[%s339] ss:$16 sm:%s340]
  %vm342 = vcmask 1047558
  %v343 = vsel %vm342, %v341, %v338
  %344 = vrot.lane.b32.xlu0 %v343, 8
  %v345 = vpop.permute.xlu0 %344
  %vm346 = vcmask 130112
  %347 = vst.msk [vmem:[%s1] sm:$0xff] %vm346, %v345

// kernel: conv_bn_relu.1
$region0: #{conv_bn_relu.1}
  #allocation0 [shape = 'u32[]', space=smem, size = 0x4, offset = 0x4, fixed_abs, tag = 'smem constant byte address 0x4 - core index']
  #allocation1 [shape = 'u32[144,128]{1,0:T(1,128)}', space=vmem, size = 0x12000, scoped, tag = 'internal scratch']
  %s0 = inlined_call_operand.vmem [shape: bf16[32,216], index: 0, kind: input, shape index: {}]
  %s1 = inlined_call_operand.vmem [shape: bf16[216,128], index: 1, kind: input, shape index: {}]
  %s2 = inlined_call_operand.vmem [shape: f32[128,8], index: 2, kind: input, shape index: {}]
  %s3 = inlined_call_operand.vmem [shape: f32[8,128], index: 3, kind: input, shape index: {}]
  %s4 = inlined_call_operand.vmem [shape: f32[2,8], index: 4, kind: input, shape index: {}]
  %s5 = inlined_call_operand.vmem [shape: f32[32,128], index: 5, kind: output, shape index: {0}]
  %s6 = inlined_call_operand.hbm [shape: f32[2,128], index: 6, kind: output, shape index: {1}]
  %7 = xla_tuple %s5, %s6
  %s8 = sld [smem:[#allocation0]]
  $region46: #{conv_bn_relu.1} parent=0
    _
  %s10 = ssub.s32 1, %s8
  %s11 = scalar_select 0, %s10, %s8
  $region1: #{conv_bn_relu.1} parent=0
    #allocation2 [shape = 'u8[1024]{0}', space=vmem, size = 0x400, scoped, tag = 'output window, operand 1, single buffered']
    #allocation3 [shape = 's32[1]{0}', space=sflag, size = 0x4, scoped, tag = 'scoped memory for conv_bn_relu.1']
    %12 = vsyncpa [#allocation3], 0
    // Predicated region
    $region2: #{conv_bn_relu.1} parent=1 // pred_check
      _
    $region3: #{conv_bn_relu.1} parent=1 // pred_check_branch
      %14 = sbr.rel (0) target = $region5
    $region4: #{conv_bn_relu.1} parent=1 // pred_region
      _
    $region5: #{conv_bn_relu.1} parent=1 // pred_fallthru
      _
    // Predicated region
    $region6: #{conv_bn_relu.1} parent=1 // pred_check
      _
    $region7: #{conv_bn_relu.1} parent=1 // pred_check_branch
      %16 = sbr.rel (0) target = $region9
    $region8: #{conv_bn_relu.1} parent=1 // pred_region
      _
    $region9: #{conv_bn_relu.1} parent=1 // pred_fallthru
      _
    // Predicated region
    $region10: #{conv_bn_relu.1} parent=1 // pred_check
      _
    $region11: #{conv_bn_relu.1} parent=1 // pred_check_branch
      %18 = sbr.rel (0) target = $region13
    $region12: #{conv_bn_relu.1} parent=1 // pred_region
      _
    $region13: #{conv_bn_relu.1} parent=1 // pred_fallthru
      _
    // Predicated region
    $region14: #{conv_bn_relu.1} parent=1 // pred_check
      _
    $region15: #{conv_bn_relu.1} parent=1 // pred_check_branch
      %20 = sbr.rel (0) target = $region17
    $region16: #{conv_bn_relu.1} parent=1 // pred_region
      _
    $region17: #{conv_bn_relu.1} parent=1 // pred_fallthru
      _
    // Predicated region
    $region18: #{conv_bn_relu.1} parent=1 // pred_check
      _
    $region19: #{conv_bn_relu.1} parent=1 // pred_check_branch
      %22 = sbr.rel (0) target = $region21
    $region20: #{conv_bn_relu.1} parent=1 // pred_region
      _
    $region21: #{conv_bn_relu.1} parent=1 // pred_fallthru
      _
    %v24 = vld [vmem:[%s0] sm:$0xff]
    %v25 = vld [vmem:[%s0 + $0x8] sm:$0xff]
    %v26 = vld [vmem:[%s0 + $0x10] sm:$0xff]
    %v27 = vld [vmem:[%s0 + $0x18] sm:$0xff]
    %v28 = vld [vmem:[%s1] sm:$0xf]
    %v29 = vld [vmem:[%s1 + $0x4] sm:$0xf]
    %v30 = vld [vmem:[%s1 + $0x8] sm:$0xf]
    %v31 = vld [vmem:[%s1 + $0xc] sm:$0xf]
    %v32 = vld [vmem:[%s1 + $0x10] sm:$0xf]
    %v33 = vld [vmem:[%s1 + $0x14] sm:$0xf]
    %v34 = vld [vmem:[%s1 + $0x18] sm:$0xf]
    %v35 = vld [vmem:[%s1 + $0x1c] sm:$0xf]
    %v36 = vld [vmem:[%s1 + $0x20] sm:$0xf]
    %v37 = vld [vmem:[%s1 + $0x24] sm:$0xf]
    %v38 = vld [vmem:[%s1 + $0x28] sm:$0xf]
    %v39 = vld [vmem:[%s1 + $0x2c] sm:$0xf]
    %v40 = vld [vmem:[%s1 + $0x30] sm:$0xf]
    %v41 = vld [vmem:[%s1 + $0x34] sm:$0xf]
    %v42 = vld [vmem:[%s1 + $0x38] sm:$0xf]
    %v43 = vld [vmem:[%s1 + $0x3c] sm:$0xf]
    %v44 = vld [vmem:[%s1 + $0x40] sm:$0xf]
    %v45 = vld [vmem:[%s1 + $0x44] sm:$0xf]
    %v46 = vld [vmem:[%s1 + $0x48] sm:$0xf]
    %v47 = vld [vmem:[%s1 + $0x4c] sm:$0xf]
    %v48 = vld [vmem:[%s1 + $0x50] sm:$0xf]
    %v49 = vld [vmem:[%s1 + $0x54] sm:$0xf]
    %v50 = vld [vmem:[%s1 + $0x58] sm:$0xf]
    %v51 = vld [vmem:[%s1 + $0x5c] sm:$0xf]
    %v52 = vld [vmem:[%s1 + $0x60] sm:$0xf]
    %v53 = vld [vmem:[%s1 + $0x64] sm:$0xf]
    %v54 = vld [vmem:[%s1 + $0x68] sm:$0xf]
    %v59 = vunpack.c.l.b16 %v24
    %v60 = vunpack.c.h.b16 %v24
    %v61 = vunpack.c.l.b16 %v25
    %v62 = vunpack.c.h.b16 %v25
    %v63 = vunpack.c.l.b16 %v26
    %v64 = vunpack.c.h.b16 %v26
    %v65 = vunpack.c.l.b16 %v27
    %v66 = vunpack.c.h.b16 %v27
    %v67 = vpack.c.b16 %v61, %v59
    %v68 = vpack.c.b16 %v62, %v60
    %v69 = vpack.c.b16 %v65, %v63
    %v70 = vpack.c.b16 %v66, %v64
    %v100 = vunpack.c.l.b16 %v28
    %v101 = vunpack.c.l.b16 %v29
    %v102 = vunpack.c.l.b16 %v30
    %v103 = vunpack.c.l.b16 %v31
    %v104 = vunpack.c.l.b16 %v32
    %v105 = vunpack.c.l.b16 %v33
    %v106 = vunpack.c.l.b16 %v34
    %v107 = vunpack.c.l.b16 %v35
    %v108 = vunpack.c.l.b16 %v36
    %v109 = vunpack.c.l.b16 %v37
    %v110 = vunpack.c.l.b16 %v38
    %v111 = vunpack.c.l.b16 %v39
    %v112 = vunpack.c.l.b16 %v40
    %v113 = vunpack.c.l.b16 %v41
    %v114 = vunpack.c.l.b16 %v42
    %v115 = vunpack.c.l.b16 %v43
    %v116 = vunpack.c.l.b16 %v44
    %v117 = vunpack.c.l.b16 %v45
    %v118 = vunpack.c.l.b16 %v46
    %v119 = vunpack.c.l.b16 %v47
    %v120 = vunpack.c.l.b16 %v48
    %v121 = vunpack.c.l.b16 %v49
    %v122 = vunpack.c.l.b16 %v50
    %v123 = vunpack.c.l.b16 %v51
    %v124 = vunpack.c.l.b16 %v52
    %v125 = vunpack.c.l.b16 %v53
    %v126 = vunpack.c.l.b16 %v54
    %v127 = vpack.c.b16 %v101, %v100
    %v128 = vpack.c.b16 %v103, %v102
    %v129 = vpack.c.b16 %v105, %v104
    %v130 = vpack.c.b16 %v107, %v106
    %v131 = vpack.c.b16 %v109, %v108
    %v132 = vpack.c.b16 %v111, %v110
    %v133 = vpack.c.b16 %v113, %v112
    %v134 = vpack.c.b16 %v115, %v114
    %v135 = vpack.c.b16 %v117, %v116
    %v136 = vpack.c.b16 %v119, %v118
    %v137 = vpack.c.b16 %v121, %v120
    %v138 = vpack.c.b16 %v123, %v122
    %v139 = vpack.c.b16 %v125, %v124
    %v140 = vpack.c.b16 %v126, %v126
    %vm154 = vcmask 719872
    %v156 = vsel %vm154, %v68, 0
    %v159 = vsel %vm154, %v70, 0
    %vm161 = vcmask 1043456
    %v163 = vsel %vm161, %v140, 0
    %165 = vmatprep.subr.bf16.mxu0 0
    %166 = vmatpush1.bf16.msra.mxu0 %v134
    %167 = vmatprep.subr.bf16.mxu0 0
    %168 = vmatpush1.bf16.msra.mxu0 %v133
    %169 = vmatprep.subr.bf16.mxu0 0
    %170 = vmatpush1.bf16.msra.mxu0 %v132
    %171 = vmatprep.subr.bf16.mxu0 0
    %172 = vmatpush1.bf16.msra.mxu0 %v131
    %173 = vmatprep.subr.bf16.mxu0 0
    %174 = vmatpush1.bf16.msra.mxu0 %v130
    %175 = vmatprep.subr.bf16.mxu0 0
    %176 = vmatpush1.bf16.msra.mxu0 %v129
    %177 = vmatprep.subr.bf16.mxu0 0
    %178 = vmatpush1.bf16.msra.mxu0 %v128
    %179 = vmatprep.subr.bf16.mxu0 0
    %180 = vmatpush1.bf16.msra.mxu0 %v127
    %181 = vmatprep.subr.bf16.mxu0 0
    %182 = vmatpush2.bf16.msra.mxu0 0
    %183 = vmatprep.subr.bf16.mxu0 0
    %184 = vmatpush2.bf16.msra.mxu0 0
    %185 = vmatprep.subr.bf16.mxu0 0
    %186 = vmatpush2.bf16.msra.mxu0 %v163
    %187 = vmatprep.subr.bf16.mxu0 0
    %188 = vmatpush2.bf16.msra.mxu0 %v139
    %189 = vmatprep.subr.bf16.mxu0 0
    %190 = vmatpush2.bf16.msra.mxu0 %v138
    %191 = vmatprep.subr.bf16.mxu0 0
    %192 = vmatpush2.bf16.msra.mxu0 %v137
    %193 = vmatprep.subr.bf16.mxu0 0
    %194 = vmatpush2.bf16.msra.mxu0 %v136
    %195 = vmatprep.subr.bf16.mxu0 0
    %196 = vmatpush2.bf16.msra.mxu0 %v135
    %197 = vmatprep.mubr.bf16.mxu0 %v156
    %198 = vmatmul.mubr.bf16.gmra.mxu0 %v67
    %v199 = vpop.f32.mrf.mxu0
    %v200 = vadd.f32 0.0, %v199
    %v201 = vpop.f32.mrf.mxu0
    %v202 = vpop.f32.mrf.mxu0
    %v203 = vadd.f32 0.0, %v202
    %v204 = vpop.f32.mrf.mxu0
    %205 = vmatprep.mubr.bf16.mxu0 %v159
    %206 = vmatmul.mubr.bf16.gmra.mxu0 %v69
    %v207 = vpop.f32.mrf.mxu0
    %v208 = vadd.f32 0.0, %v207
    %v209 = vpop.f32.mrf.mxu0
    %v210 = vpop.f32.mrf.mxu0
    %v211 = vadd.f32 0.0, %v210
    %v212 = vpop.f32.mrf.mxu0
    %213 = vdwg.mxu0
    %v214 = vadd.f32 %v200, %v203
    %v215 = vadd.f32 %v214, %v208
    %v216 = vadd.f32 %v215, %v211
    %v217 = vrot.slane %v216, 4
    %v218 = vadd.f32 %v216, %v217
    %v219 = vrot.slane %v218, 2
    %v220 = vadd.f32 %v218, %v219
    %v221 = vrot.slane %v220, 1
    %v222 = vadd.f32 %v220, %v221
    %v223 = vmul.f32 %v200, %v200
    %v224 = vmul.f32 %v203, %v203
    %v225 = vmul.f32 %v208, %v208
    %v226 = vmul.f32 %v211, %v211
    %v227 = vadd.f32 %v223, %v224
    %v228 = vadd.f32 %v227, %v225
    %v229 = vadd.f32 %v228, %v226
    %v230 = vrot.slane %v229, 4
    %v231 = vadd.f32 %v229, %v230
    %v232 = vrot.slane %v231, 2
    %v233 = vadd.f32 %v231, %v232
    %v234 = vrot.slane %v233, 1
    %v235 = vadd.f32 %v233, %v234
    %vm236 = vcmask 1040384
    %v237 = vsel %vm236, %v222, %v235
    %p238 = scmp.eq.s32.totalorder 0, 0
    // Predicated region
    $region22: #{conv_bn_relu.1} parent=1 // pred_check
      %p239 = pneg %p238
    $region23: #{conv_bn_relu.1} parent=1 // pred_check_branch
      %241 = sbr.rel (%p239) target = $region25
    $region24: #{conv_bn_relu.1} parent=1 // pred_region
      %242 = vst [vmem:[#allocation2] sm:$0x3] %v237
    $region25: #{conv_bn_relu.1} parent=1 // pred_fallthru
      _
    %p243 = scmp.ne.s32.totalorder 0, 0
    // Predicated region
    $region26: #{conv_bn_relu.1} parent=1 // pred_check
      %p244 = pneg %p243
    $region27: #{conv_bn_relu.1} parent=1 // pred_check_branch
      %246 = sbr.rel (%p244) target = $region29
    $region28: #{conv_bn_relu.1} parent=1 // pred_region
      %v247 = vld [vmem:[#allocation2] sm:$0x3]
      %v248 = vadd.f32 %v247, %v237
      %249 = vst [vmem:[#allocation2] sm:$0x3] %v248
    $region29: #{conv_bn_relu.1} parent=1 // pred_fallthru
      _
    %v250 = vld [vmem:[%s2] sm:$0xff]
    %v251 = vld [vmem:[%s2 + $0x8] sm:$0xff]
    %v252 = vld [vmem:[%s2 + $0x10] sm:$0xff]
    %v253 = vld [vmem:[%s2 + $0x18] sm:$0xff]
    %v254 = vld [vmem:[%s2 + $0x20] sm:$0xff]
    %v255 = vld [vmem:[%s2 + $0x28] sm:$0xff]
    %v256 = vld [vmem:[%s2 + $0x30] sm:$0xff]
    %v257 = vld [vmem:[%s2 + $0x38] sm:$0xff]
    %v258 = vld [vmem:[%s2 + $0x40] sm:$0xff]
    %v259 = vld [vmem:[%s2 + $0x48] sm:$0xff]
    %v260 = vld [vmem:[%s2 + $0x50] sm:$0xff]
    %v261 = vld [vmem:[%s2 + $0x58] sm:$0xff]
    %v262 = vld [vmem:[%s2 + $0x60] sm:$0xff]
    %v263 = vld [vmem:[%s2 + $0x68] sm:$0xff]
    %v264 = vld [vmem:[%s2 + $0x70] sm:$0xff]
    %v265 = vld [vmem:[%s2 + $0x78] sm:$0xff]
    %266 = vmatprep.subr.mxu0 0.0
    %267 = vmatpush1.msra.mxu0 %v265
    %268 = vmatprep.subr.mxu0 0.0
    %269 = vmatpush1.msra.mxu0 %v264
    %270 = vmatprep.subr.mxu0 0.0
    %271 = vmatpush1.msra.mxu0 %v263
    %272 = vmatprep.subr.mxu0 0.0
    %273 = vmatpush1.msra.mxu0 %v262
    %274 = vmatprep.subr.mxu0 0.0
    %275 = vmatpush1.msra.mxu0 %v261
    %276 = vmatprep.subr.mxu0 0.0
    %277 = vmatpush1.msra.mxu0 %v260
    %278 = vmatprep.subr.mxu0 0.0
    %279 = vmatpush1.msra.mxu0 %v259
    %280 = vmatprep.subr.mxu0 0.0
    %281 = vmatpush1.msra.mxu0 %v258
    %282 = vmatprep.subr.mxu0 0.0
    %283 = vmatpush1.msra.mxu0 %v257
    %284 = vmatprep.subr.mxu0 0.0
    %285 = vmatpush1.msra.mxu0 %v256
    %286 = vmatprep.subr.mxu0 0.0
    %287 = vmatpush1.msra.mxu0 %v255
    %288 = vmatprep.subr.mxu0 0.0
    %289 = vmatpush1.msra.mxu0 %v254
    %290 = vmatprep.subr.mxu0 0.0
    %291 = vmatpush1.msra.mxu0 %v253
    %292 = vmatprep.subr.mxu0 0.0
    %293 = vmatpush1.msra.mxu0 %v252
    %294 = vmatprep.subr.mxu0 0.0
    %295 = vmatpush1.msra.mxu0 %v251
    %296 = vmatprep.subr.mxu0 0.0
    %297 = vmatpush1.msra.mxu0 %v250
    %298 = vmatprep.subr.mxu0 0.0
    %299 = vmatpush2.msra.mxu0 0.0
    %300 = vmatprep.subr.mxu0 0.0
    %301 = vmatpush2.msra.mxu0 0.0
    %302 = vmatprep.subr.mxu0 0.0
    %303 = vmatpush2.msra.mxu0 0.0
    %304 = vmatprep.subr.mxu0 0.0
    %305 = vmatpush2.msra.mxu0 0.0
    %306 = vmatprep.subr.mxu0 0.0
    %307 = vmatpush2.msra.mxu0 0.0
    %308 = vmatprep.subr.mxu0 0.0
    %309 = vmatpush2.msra.mxu0 0.0
    %310 = vmatprep.subr.mxu0 0.0
    %311 = vmatpush2.msra.mxu0 0.0
    %312 = vmatprep.subr.mxu0 0.0
    %313 = vmatpush2.msra.mxu0 0.0
    %314 = vmatprep.subr.mxu0 0.0
    %315 = vmatpush2.msra.mxu0 0.0
    %316 = vmatprep.subr.mxu0 0.0
    %317 = vmatpush2.msra.mxu0 0.0
    %318 = vmatprep.subr.mxu0 0.0
    %319 = vmatpush2.msra.mxu0 0.0
    %320 = vmatprep.subr.mxu0 0.0
    %321 = vmatpush2.msra.mxu0 0.0
    %322 = vmatprep.subr.mxu0 0.0
    %323 = vmatpush2.msra.mxu0 0.0
    %324 = vmatprep.subr.mxu0 0.0
    %325 = vmatpush2.msra.mxu0 0.0
    %326 = vmatprep.subr.mxu0 0.0
    %327 = vmatpush2.msra.mxu0 0.0
    %328 = vmatprep.subr.mxu0 0.0
    %329 = vmatpush2.msra.mxu0 0.0
    %330 = vmatprep.mubr.f32.mxu0 0.0
    %331 = vmatmul.mubr.f32.gmra.mxu0 %v237
    %v332 = vpop.f32.mrf.mxu0
    %v333 = vadd.f32 0.0, %v332
    %v334 = vpop.f32.mrf.mxu0
    %335 = vdwg.mxu0
    %v336 = vmul.f32 %v333, 0.001953125
    %v337 = vmul.f32 %v336, %v336
    %v339 = vrot.slane %v337, 7
    %v341 = vsub.f32 %v336, %v339
    %v342 = vld [vmem:[%s4] sm:$0x1]
    %v343 = vadd.f32 %v341, 1e-05
    %v344 = vrsqrt.pop %v343
    %v346 = vrot.slane %v344, 1
    %v348 = vmul.f32 %v342, %v346
    %v349 = vld [vmem:[%s4 + $0x1] sm:$0x1]
    %v350 = vmul.f32 %v336, %v348
    %v351 = vsub.f32 %v349, %v350
    %v353 = vrot.slane %v351, 7
    %v355 = vsel %vm236, %v348, %v353
    %v356 = vld [vmem:[%s3] sm:$0xff]
    %vm357 = vcmask 64512
    %v359 = vsel %vm357, %v355, 0
    %361 = vmatprep.subr.mxu0 0.0
    %362 = vmatpush1.msra.mxu0 0.0
    %363 = vmatprep.subr.mxu0 0.0
    %364 = vmatpush1.msra.mxu0 0.0
    %365 = vmatprep.subr.mxu0 0.0
    %366 = vmatpush1.msra.mxu0 0.0
    %367 = vmatprep.subr.mxu0 0.0
    %368 = vmatpush1.msra.mxu0 0.0
    %369 = vmatprep.subr.mxu0 0.0
    %370 = vmatpush1.msra.mxu0 0.0
    %371 = vmatprep.subr.mxu0 0.0
    %372 = vmatpush1.msra.mxu0 0.0
    %373 = vmatprep.subr.mxu0 0.0
    %374 = vmatpush1.msra.mxu0 0.0
    %375 = vmatprep.subr.mxu0 0.0
    %376 = vmatpush1.msra.mxu0 0.0
    %377 = vmatprep.subr.mxu0 0.0
    %378 = vmatpush1.msra.mxu0 0.0
    %379 = vmatprep.subr.mxu0 0.0
    %380 = vmatpush1.msra.mxu0 0.0
    %381 = vmatprep.subr.mxu0 0.0
    %382 = vmatpush1.msra.mxu0 0.0
    %383 = vmatprep.subr.mxu0 0.0
    %384 = vmatpush1.msra.mxu0 0.0
    %385 = vmatprep.subr.mxu0 0.0
    %386 = vmatpush1.msra.mxu0 0.0
    %387 = vmatprep.subr.mxu0 0.0
    %388 = vmatpush1.msra.mxu0 0.0
    %389 = vmatprep.subr.mxu0 0.0
    %390 = vmatpush1.msra.mxu0 0.0
    %391 = vmatprep.subr.mxu0 0.0
    %392 = vmatpush1.msra.mxu0 %v356
    %393 = vmatprep.subr.mxu0 0.0
    %394 = vmatpush2.msra.mxu0 0.0
    %395 = vmatprep.subr.mxu0 0.0
    %396 = vmatpush2.msra.mxu0 0.0
    %397 = vmatprep.subr.mxu0 0.0
    %398 = vmatpush2.msra.mxu0 0.0
    %399 = vmatprep.subr.mxu0 0.0
    %400 = vmatpush2.msra.mxu0 0.0
    %401 = vmatprep.subr.mxu0 0.0
    %402 = vmatpush2.msra.mxu0 0.0
    %403 = vmatprep.subr.mxu0 0.0
    %404 = vmatpush2.msra.mxu0 0.0
    %405 = vmatprep.subr.mxu0 0.0
    %406 = vmatpush2.msra.mxu0 0.0
    %407 = vmatprep.subr.mxu0 0.0
    %408 = vmatpush2.msra.mxu0 0.0
    %409 = vmatprep.subr.mxu0 0.0
    %410 = vmatpush2.msra.mxu0 0.0
    %411 = vmatprep.subr.mxu0 0.0
    %412 = vmatpush2.msra.mxu0 0.0
    %413 = vmatprep.subr.mxu0 0.0
    %414 = vmatpush2.msra.mxu0 0.0
    %415 = vmatprep.subr.mxu0 0.0
    %416 = vmatpush2.msra.mxu0 0.0
    %417 = vmatprep.subr.mxu0 0.0
    %418 = vmatpush2.msra.mxu0 0.0
    %419 = vmatprep.subr.mxu0 0.0
    %420 = vmatpush2.msra.mxu0 0.0
    %421 = vmatprep.subr.mxu0 0.0
    %422 = vmatpush2.msra.mxu0 0.0
    %423 = vmatprep.subr.mxu0 0.0
    %424 = vmatpush2.msra.mxu0 0.0
    %425 = vmatprep.mubr.f32.mxu0 0.0
    %426 = vmatmul.mubr.f32.gmra.mxu0 %v359
    %v427 = vpop.f32.mrf.mxu0
    %v428 = vadd.f32 0.0, %v427
    %v429 = vpop.f32.mrf.mxu0
    %430 = vdwg.mxu0
    %v431 = vlaneseq
    %v432 = vshrl.u32 %v431, 7
    %v433 = vsub.s32 0, %v432
    %v434 = vrot.slane %v428, %v433
    %v435 = vmul.f32 %v200, %v434
    %v436 = vmul.f32 %v203, %v434
    %v437 = vmul.f32 %v208, %v434
    %v438 = vmul.f32 %v211, %v434
    %v439 = vlaneseq
    %v440 = vshrl.u32 %v439, 7
    %v441 = vsub.s32 1, %v440
    %v442 = vrot.slane %v428, %v441
    %v443 = vadd.f32 %v435, %v442
    %v444 = vadd.f32 %v436, %v442
    %v445 = vadd.f32 %v437, %v442
    %v446 = vadd.f32 %v438, %v442
    %v447 = vmax.f32 %v443, 0.0
    %v448 = vmax.f32 %v444, 0.0
    %v449 = vmax.f32 %v445, 0.0
    %v450 = vmax.f32 %v446, 0.0
    %451 = vst [vmem:[%s5] sm:$0xff] %v447
    %452 = vst [vmem:[%s5 + $0x8] sm:$0xff] %v448
    %453 = vst [vmem:[%s5 + $0x10] sm:$0xff] %v449
    %454 = vst [vmem:[%s5 + $0x18] sm:$0xff] %v450
    %455 = vst [vmem:[#allocation2] sm:$0x3] %v428
    // Predicated region
    $region30: #{conv_bn_relu.1} parent=1 // pred_check
      _
    $region31: #{conv_bn_relu.1} parent=1 // pred_check_branch
      %457 = sbr.rel (0) target = $region33
    $region32: #{conv_bn_relu.1} parent=1 // pred_region
      _
    $region33: #{conv_bn_relu.1} parent=1 // pred_fallthru
      _
    // Predicated region
    $region34: #{conv_bn_relu.1} parent=1 // pred_check
      _
    $region35: #{conv_bn_relu.1} parent=1 // pred_check_branch
      %459 = sbr.rel (0) target = $region37
    $region36: #{conv_bn_relu.1} parent=1 // pred_region
      %s461 = ssub.s32 32, 32
      %462 = vsyncadd [#allocation3], %s461
      %s464 = sshll.u32 [#allocation2], 4
      %s465 = int_to_ptr.vmem [resolvable:$true] %s464
      %467 = dma.vmem_to_hbm [thread:$0]  %s465, 32, %s6, [#allocation3]
    $region37: #{conv_bn_relu.1} parent=1 // pred_fallthru
      _
    // Predicated region
    $region38: #{conv_bn_relu.1} parent=1 // pred_check
      _
    $region39: #{conv_bn_relu.1} parent=1 // pred_check_branch
      %469 = sbr.rel (0) target = $region41
    $region40: #{conv_bn_relu.1} parent=1 // pred_region
      _
    $region41: #{conv_bn_relu.1} parent=1 // pred_fallthru
      _
    // Predicated region
    $region42: #{conv_bn_relu.1} parent=1 // pred_check
      _
    $region43: #{conv_bn_relu.1} parent=1 // pred_check_branch
      %471 = sbr.rel (0) target = $region45
    $region44: #{conv_bn_relu.1} parent=1 // pred_region
      %472 = dma.done [#allocation3], 32
    $region45: #{conv_bn_relu.1} parent=1 // pred_fallthru
      _
    %473 = vsyncpa [#allocation3], 1

</llo_original>
